<compile_context>
chip_gen: v7x
topology: tpu7x:2x2x1
jax: 0.10.0
libtpu: 0.0.40
codegen_flags: <defaults>
</compile_context>

<pallas_src>
import math

import jax
import jax.numpy as jnp
from jax.experimental import pallas as pl
from jax.experimental.pallas import tpu as pltpu


def make_positional_encoding(embedding_dim: int, max_length: int = 512) -> jnp.ndarray:
    """Sinusoidal table identical to the torch __init__ math. Shape (L, D)."""
    position = jnp.arange(max_length, dtype=jnp.float32)[:, None]              # (L, 1)
    div_term = jnp.exp(
        jnp.arange(0, embedding_dim, 2, dtype=jnp.float32)
        * (-math.log(10000.0) / embedding_dim)
    )                                                                          # (D/2,)
    angles = position * div_term                                               # (L, D/2)
    pe = jnp.zeros((max_length, embedding_dim), dtype=jnp.float32)
    pe = pe.at[:, 0::2].set(jnp.sin(angles))
    pe = pe.at[:, 1::2].set(jnp.cos(angles))
    return pe


def _make_add_pe_kernel(dim: int, tile_bd: int):
    """Build the per-tile kernel. x_ref/o_ref: (TS, tile_bd); pe_ref: (TS, dim)."""
    nb = tile_bd // dim   # batches per lane-tile (static)

    if nb == 1:
        def kernel(x_ref, pe_ref, o_ref):
            o_ref[...] = x_ref[...] + pe_ref[...]
    elif dim % 128 == 0:
        # No broadcast temporary: per-batch aligned slice add+store.
        def kernel(x_ref, pe_ref, o_ref):
            pe = pe_ref[...]
            for b in range(nb):
                sl = pl.ds(b * dim, dim)          # static, lane-aligned
                o_ref[:, sl] = x_ref[:, sl] + pe
    else:
        # dim is not a lane multiple: keep the lane-dense full-tile store
        # (the broadcast temporary is accounted for in the VMEM budget).
        def kernel(x_ref, pe_ref, o_ref):
            pe = jnp.concatenate([pe_ref[...]] * nb, axis=1)
            o_ref[...] = x_ref[...] + pe
    return kernel


def _choose_tiles(seq_len: int, batch: int, dim: int, itemsize: int,
                  *, target_bytes: int = 4 << 20, min_steps: int = 8):
    """Pick (rows, tile_bd): ~4 MiB x-tiles, multiple-of-8 rows, >= ~8 seq steps."""
    bd = batch * dim
    rows = max(8, (target_bytes // max(1, bd * itemsize)) // 8 * 8)
    tile_bd = bd

    if 8 * bd * itemsize > target_bytes:
        # Even 8 full-width rows exceed the budget: tile the lane axis in
        # per-batch chunks (keeps pe alignment), second "parallel" grid axis.
        max_nb = max(1, target_bytes // max(1, 8 * dim * itemsize))
        nb = min(batch, max_nb)
        while nb >= 1 and (nb * dim) % 128 != 0:   # lane-tile must be 128-aligned
            nb -= 1
        if nb < 1:
            return None                            # awkward shape -> XLA fallback
        tile_bd = nb * dim
        rows = 8
        if 8 * tile_bd * itemsize > 2 * target_bytes:
            return None                            # single dim row too big -> XLA

    # Keep >= ~min_steps sequence steps when S allows it, so the default
    # double-buffered pipeline actually overlaps DMA with compute per core.
    if seq_len >= min_steps * 8:
        rows = min(rows, max(8, (seq_len // min_steps) // 8 * 8))
    rows = min(rows, (seq_len + 7) // 8 * 8)
    return rows, tile_bd


def fixed_positional_encoding(x: jnp.ndarray, pe_table: jnp.ndarray,
                              *, use_pallas: bool = True) -> jnp.ndarray:
    """x: (S, B, D); pe_table: (max_length, D). Returns x + pe_table[:S] (batch-broadcast)."""
    seq_len, batch, dim = x.shape
    max_length, dim2 = pe_table.shape
    assert dim == dim2 and seq_len <= max_length

    # Pre-cast pe to the activation dtype (halves pe DMA bytes for bf16 x).
    pe = pe_table.astype(x.dtype)
    bd = batch * dim
    itemsize = x.dtype.itemsize
    total_bytes = seq_len * bd * itemsize

    tiles = None
    if use_pallas and seq_len >= 8 and bd >= 128 and total_bytes >= (512 << 10):
        tiles = _choose_tiles(seq_len, batch, dim, itemsize)

    if tiles is None:
        # Tiny / sub-lane-width / degenerate shapes: XLA's fused broadcast-add.
        return (x + pe[:seq_len][:, None, :]).astype(x.dtype)

    ts, tile_bd = tiles
    x2 = x.reshape(seq_len, bd)                    # free row-major view, lane-dense
    grid = (pl.cdiv(seq_len, ts), pl.cdiv(bd, tile_bd))

    # Per-step VMEM: double-buffered x + out + pe tiles, plus the broadcast
    # temporary only when dim is not a lane multiple. Raise the scoped limit
    # (v5e default is 16 MiB) but stay safely under v7x's 64 MiB physical.
    x_tile = ts * tile_bd * itemsize
    pe_tile = ts * dim * pe.dtype.itemsize
    temp = x_tile if (tile_bd // dim > 1 and dim % 128 != 0) else 0
    needed = 4 * x_tile + 2 * pe_tile + temp
    vmem_limit = min(48 << 20, max(32 << 20, int(1.5 * needed)))

    out2 = pl.pallas_call(
        _make_add_pe_kernel(dim, tile_bd),
        out_shape=jax.ShapeDtypeStruct((seq_len, bd), x.dtype),
        grid=grid,
        in_specs=[
            pl.BlockSpec((ts, tile_bd), lambda i, j: (i, j)),   # x slab tile
            pl.BlockSpec((ts, dim), lambda i, j: (i, 0)),       # pe rows (full table passed)
        ],
        out_specs=pl.BlockSpec((ts, tile_bd), lambda i, j: (i, j)),
        compiler_params=pltpu.CompilerParams(
            dimension_semantics=("parallel", "parallel"),       # lets v7x use both TCs
            vmem_limit_bytes=vmem_limit,
        ),
        cost_estimate=pl.CostEstimate(
            flops=seq_len * bd,
            transcendentals=0,
            bytes_accessed=2 * total_bytes
            + grid[1] * seq_len * dim * pe.dtype.itemsize,
        ),
    )(x2, pe)
    # TODO(synk): optionally pass input_output_aliases={0: 0} when the caller donates x.

    return out2.reshape(seq_len, batch, dim)


if __name__ == "__main__":
    key = jax.random.PRNGKey(0)
    k1, k2, k3 = jax.random.split(key, 3)

    # --- small shape from the module spec (seq=8, batch=2, hidden=32): fallback path ---
    seq_len, batch, embedding_dim, max_length = 8, 2, 32, 512
    pe_small = make_positional_encoding(embedding_dim, max_length)
    x_small = jax.random.normal(k1, (seq_len, batch, embedding_dim), jnp.float32)
    out_small = jax.block_until_ready(fixed_positional_encoding(x_small, pe_small))
    ref_small = x_small + pe_small[:seq_len][:, None, :]
    assert out_small.shape == (seq_len, batch, embedding_dim)
    assert jnp.allclose(out_small, ref_small, atol=1e-6), "small-shape mismatch"

    # --- Pallas path, dim % 128 == 0 (per-batch aligned slice stores, 8-step grid) ---
    S2, B2, D2, L2 = 2048, 2, 128, 2048
    pe_big = make_positional_encoding(D2, L2)
    x_big = jax.random.normal(k2, (S2, B2, D2), jnp.float32)
    out_big = jax.block_until_ready(fixed_positional_encoding(x_big, pe_big))
    ref_big = x_big + pe_big[:S2][:, None, :]
    assert out_big.shape == (S2, B2, D2)
    assert jnp.allclose(out_big, ref_big, atol=1e-6), "large-shape mismatch"

    # --- Pallas path, dim not a lane multiple (lane-dense broadcast branch) ---
    S3, B3, D3, L3 = 512, 4, 96, 512
    pe_odd = make_positional_encoding(D3, L3)
    x_odd = jax.random.normal(k3, (S3, B3, D3), jnp.float32)
    out_odd = jax.block_until_ready(fixed_positional_encoding(x_odd, pe_odd))
    ref_odd = x_odd + pe_odd[:S3][:, None, :]
    assert out_odd.shape == (S3, B3, D3)
    assert jnp.allclose(out_odd, ref_odd, atol=1e-6), "odd-dim mismatch"

    print("KERNEL_OK")
</pallas_src>

<mosaic_0001>
module attributes {stable_mosaic.version = 11 : i64} {
  func.func @kernel(%arg0: i32, %arg1: i32, %arg2: memref<256x256xf32, #tpu.memory_space<vmem>>, %arg3: memref<256x128xf32, #tpu.memory_space<vmem>>, %arg4: memref<256x256xf32, #tpu.memory_space<vmem>>) attributes {dimension_semantics = [#tpu.dimension_semantics<parallel>, #tpu.dimension_semantics<parallel>], iteration_bounds = array<i64: 8, 1>, scalar_prefetch = 0 : i64, scratch_operands = 0 : i64, tpu.core_type = #tpu.core_type<tc>, window_params = [{transform_indices = @transform_0, window_bounds = array<i64: 256, 256>}, {transform_indices = @transform_1, window_bounds = array<i64: 256, 128>}, {transform_indices = @transform_2, window_bounds = array<i64: 256, 256>}]} {
    %c0 = arith.constant 0 : index
    %c0_0 = arith.constant 0 : index
    %0 = vector.load %arg3[%c0, %c0_0] : memref<256x128xf32, #tpu.memory_space<vmem>>, vector<256x128xf32>
    %c0_1 = arith.constant 0 : index
    %c0_2 = arith.constant 0 : index
    %1 = vector.load %arg2[%c0_1, %c0_2] : memref<256x256xf32, #tpu.memory_space<vmem>>, vector<256x128xf32>
    %2 = arith.addf %1, %0 : vector<256x128xf32>
    %c0_3 = arith.constant 0 : index
    %c0_4 = arith.constant 0 : index
    %3 = vector.load %arg4[%c0_3, %c0_4] : memref<256x256xf32, #tpu.memory_space<vmem>>, vector<256x128xf32>
    tpu.vector_store %arg4[%c0_3, %c0_4], %2 {strides = array<i32>} : memref<256x256xf32, #tpu.memory_space<vmem>>, vector<256x128xf32>,
    %c0_5 = arith.constant 0 : index
    %c128 = arith.constant 128 : index
    %4 = vector.load %arg2[%c0_5, %c128] : memref<256x256xf32, #tpu.memory_space<vmem>>, vector<256x128xf32>
    %5 = arith.addf %4, %0 : vector<256x128xf32>
    %c0_6 = arith.constant 0 : index
    %c128_7 = arith.constant 128 : index
    %6 = vector.load %arg4[%c0_6, %c128_7] : memref<256x256xf32, #tpu.memory_space<vmem>>, vector<256x128xf32>
    tpu.vector_store %arg4[%c0_6, %c128_7], %5 {strides = array<i32>} : memref<256x256xf32, #tpu.memory_space<vmem>>, vector<256x128xf32>,
    return
  }
  func.func @transform_0(%arg0: i32, %arg1: i32) -> (i32, i32) {
    %c0_i32 = arith.constant 0 : i32
    return %arg0, %arg1 : i32, i32
  }
  func.func @transform_1(%arg0: i32, %arg1: i32) -> (i32, i32) {
    %c0_i32 = arith.constant 0 : i32
    %c0_i32_0 = arith.constant 0 : i32
    return %arg0, %c0_i32 : i32, i32
  }
  func.func @transform_2(%arg0: i32, %arg1: i32) -> (i32, i32) {
    %c0_i32 = arith.constant 0 : i32
    return %arg0, %arg1 : i32, i32
  }
}

</mosaic_0001>

<llo_original>
// kernel: tpu_custom_call.1
$region0: #{tpu_custom_call.1}
  #allocation0 [shape = 'u32[]', space=smem, size = 0x4, offset = 0x4, fixed_abs, tag = 'smem constant byte address 0x4 - core index']
  #allocation1 [shape = 'u32[144,128]{1,0:T(1,128)}', space=vmem, size = 0x12000, scoped, tag = 'internal scratch']
  %s0 = inlined_call_operand.hbm [shape: f32[2048,256], index: 0, kind: input, shape index: {}]
  %s1 = inlined_call_operand.hbm [shape: f32[2048,128], index: 1, kind: input, shape index: {}]
  %s2 = inlined_call_operand.hbm [shape: f32[2048,256], index: 2, kind: output, shape index: {}]
  %s3 = sld [smem:[#allocation0]]
  $region49: #{tpu_custom_call.1} parent=0
    _
  %s5 = ssub.s32 1, %s3
  %s6 = scalar_select 0, %s5, %s3
  $region1: #{tpu_custom_call.1} parent=0
    #allocation2 [shape = 'u8[524288]{0}', space=vmem, size = 0x80000, scoped, tag = 'input window, operand 0']
    #allocation3 [shape = 's32[2]{0}', space=sflag, size = 0x8, scoped, tag = 'scoped memory for tpu_custom_call.1']
    #allocation4 [shape = 's32[2]{0}', space=sflag, size = 0x8, scoped, tag = 'scoped memory for tpu_custom_call.1']
    #allocation5 [shape = 'u8[262144]{0}', space=vmem, size = 0x40000, scoped, tag = 'input window, operand 1']
    #allocation6 [shape = 's32[2]{0}', space=sflag, size = 0x8, scoped, tag = 'scoped memory for tpu_custom_call.1']
    #allocation7 [shape = 'u8[524288]{0}', space=vmem, size = 0x80000, scoped, tag = 'output window, operand 0']
    %7 = vsyncpa [#allocation3], 0
    %s8 = scalar_lea.sflag [#allocation3], 1
    %9 = vsyncpa %s8, 0
    %10 = vsyncpa [#allocation6], 0
    %s11 = scalar_lea.sflag [#allocation6], 1
    %12 = vsyncpa %s11, 0
    %13 = vsyncpa [#allocation4], 0
    %s14 = scalar_lea.sflag [#allocation4], 1
    %15 = vsyncpa %s14, 0
    loop: start=0, step=1, limit=10
    $region2: #{tpu_custom_call.1} parent=1 // loop_pre_header
      _
    $region3: #{tpu_custom_call.1} parent=1 // loop_header
      %s17 = sphi 0, %s21
      %p18 = scmp.ge.s32.totalorder %s17, 10
      %s24 = sphi 0, %s36
      %s25 = sphi 0, %s32
      %s26 = sphi 0, %s24
      %s27 = sphi 0, %s25
      %s28 = sphi 0, %s26
      %s29 = sphi 0, %s27
      %s41 = sphi 0, %s43
      %s44 = sphi 0, %s41
      %s45 = sphi 0, %s44
      %s61 = sphi 0, %s45
      %s67 = sphi 0, %s69
      %s70 = sphi 0, %s67
      %s71 = sphi 0, %s70
      %s87 = sphi 0, %s71
      %s95 = sphi 0, %s97
      %s98 = sphi 0, %s95
      %s99 = sphi 0, %s98
      %s115 = sphi 0, %s99
    $region4: #{tpu_custom_call.1} parent=1 // loop_header_branch
      %20 = sbr.rel (%p18) target = $region8
    $region5: #{tpu_custom_call.1} parent=1 // loop_body
      %s22 = ssub.s32 %s17, 1
      %s23 = ssub.s32 %s17, 2
      %s30 = sadd.s32 1, %s25
      %p31 = scmp.ge.s32.totalorder %s30, 1
      %s32 = scalar_select %p31, 0, %s30
      %s33 = sadd.s32 1, %s24
      %s34 = scalar_select %p31, %s33, %s24
      %p35 = scmp.ge.s32.totalorder %s34, 8
      %s36 = scalar_select %p35, 0, %s34
      %s37 = ssub.s32 %s24, %s36
      %s38 = ssub.s32 %s25, %s32
      %s39 = sor.u32 %s37, %s38
      %p40 = scmp.eq.s32.totalorder %s39, 0
      %s42 = sadd.s32 %s41, 1
      %s43 = scalar_select %p40, %s41, %s42
      %p46 = pneg %p40
      %p47 = scmp.eq.s32.totalorder %s17, 7
      %p48 = por %p46, %p47
      %p49 = scmp.ne.s32.totalorder %s41, %s44
      %p50 = scmp.eq.s32.totalorder %s17, 0
      %p51 = por %p49, %p50
      %p52 = scmp.ne.s32.totalorder %s41, %s44
      %p53 = scmp.eq.s32.totalorder %s22, 7
      %p54 = por %p52, %p53
      %p55 = scmp.ne.s32.totalorder %s44, %s45
      %p56 = scmp.eq.s32.totalorder %s22, 0
      %p57 = por %p55, %p56
      %p58 = scmp.ne.s32.totalorder %s44, %s45
      %p59 = scmp.eq.s32.totalorder %s23, 7
      %p60 = por %p58, %p59
      %p62 = scmp.ne.s32.totalorder %s45, %s61
      %p63 = scmp.eq.s32.totalorder %s23, 0
      %p64 = por %p62, %p63
      %s65 = ssub.s32 %s24, %s36
      %p66 = scmp.eq.s32.totalorder %s65, 0
      %s68 = sadd.s32 %s67, 1
      %s69 = scalar_select %p66, %s67, %s68
      %p72 = pneg %p66
      %p73 = scmp.eq.s32.totalorder %s17, 7
      %p74 = por %p72, %p73
      %p75 = scmp.ne.s32.totalorder %s67, %s70
      %p76 = scmp.eq.s32.totalorder %s17, 0
      %p77 = por %p75, %p76
      %p78 = scmp.ne.s32.totalorder %s67, %s70
      %p79 = scmp.eq.s32.totalorder %s22, 7
      %p80 = por %p78, %p79
      %p81 = scmp.ne.s32.totalorder %s70, %s71
      %p82 = scmp.eq.s32.totalorder %s22, 0
      %p83 = por %p81, %p82
      %p84 = scmp.ne.s32.totalorder %s70, %s71
      %p85 = scmp.eq.s32.totalorder %s23, 7
      %p86 = por %p84, %p85
      %p88 = scmp.ne.s32.totalorder %s71, %s87
      %p89 = scmp.eq.s32.totalorder %s23, 0
      %p90 = por %p88, %p89
      %s91 = ssub.s32 %s24, %s36
      %s92 = ssub.s32 %s25, %s32
      %s93 = sor.u32 %s91, %s92
      %p94 = scmp.eq.s32.totalorder %s93, 0
      %s96 = sadd.s32 %s95, 1
      %s97 = scalar_select %p94, %s95, %s96
      %p100 = pneg %p94
      %p101 = scmp.eq.s32.totalorder %s17, 7
      %p102 = por %p100, %p101
      %p103 = scmp.ne.s32.totalorder %s95, %s98
      %p104 = scmp.eq.s32.totalorder %s17, 0
      %p105 = por %p103, %p104
      %p106 = scmp.ne.s32.totalorder %s95, %s98
      %p107 = scmp.eq.s32.totalorder %s22, 7
      %p108 = por %p106, %p107
      %p109 = scmp.ne.s32.totalorder %s98, %s99
      %p110 = scmp.eq.s32.totalorder %s22, 0
      %p111 = por %p109, %p110
      %p112 = scmp.ne.s32.totalorder %s98, %s99
      %p113 = scmp.eq.s32.totalorder %s23, 7
      %p114 = por %p112, %p113
      %p116 = scmp.ne.s32.totalorder %s99, %s115
      %p117 = scmp.eq.s32.totalorder %s23, 0
      %p118 = por %p116, %p117
      %p119 = scmp.le.s32.totalorder 1, %s17
      %p120 = scmp.lt.s32.totalorder %s17, 9
      %p121 = pnand %p119, %p120
      %p122 = pneg %p121
      // Predicated region
      $region9: #{tpu_custom_call.1} parent=5 // pred_check
        _
      $region10: #{tpu_custom_call.1} parent=5 // pred_check_branch
        %124 = sbr.rel (%p121) target = $region12
      $region11: #{tpu_custom_call.1} parent=5 // pred_region
        %s125 = ssub.s32 %s17, 1
      $region12: #{tpu_custom_call.1} parent=5 // pred_fallthru
        _
      %p126 = scmp.lt.s32.totalorder %s17, 8
      // Predicated region
      $region13: #{tpu_custom_call.1} parent=5 // pred_check
        %p127 = pneg %p126
      $region14: #{tpu_custom_call.1} parent=5 // pred_check_branch
        %129 = sbr.rel (%p127) target = $region16
      $region15: #{tpu_custom_call.1} parent=5 // pred_region
        // Predicated region
        $region17: #{tpu_custom_call.1} parent=15 // pred_check
          %p130 = pneg %p51
        $region18: #{tpu_custom_call.1} parent=15 // pred_check_branch
          %132 = sbr.rel (%p130) target = $region20
        $region19: #{tpu_custom_call.1} parent=15 // pred_region
          %s133 = sand.u32 %s41, 1
          %s134 = scalar_lea.sflag [#allocation3], %s133
          %s135 = sand.u32 %s41, 1
          %s136 = smul.addr %s135, 512
          %s137 = scalar_lea.vmem [#allocation2], %s136
          %s138 = smul.u32 32, %s24
          %s139 = smul.u32 2, %s25
          %s141 = ssub.s32 8192, 8192
          %142 = vsyncadd %s134, %s141
          %s143 = smul.addr %s138, 2
          %s144 = sadd.s32 %s139, %s143
          %s145 = smul.addr %s144, 128
          %s146 = scalar_lea.hbm %s0, %s145
          %s147 = sshll.u32 %s137, 4
          %s148 = int_to_ptr.vmem [resolvable:$true] %s147
          %153 = dma.hbm_to_vmem [thread:$0]  %s146, 8192, %s148, %s134, 256, 256, 16
        $region20: #{tpu_custom_call.1} parent=15 // pred_fallthru
          _
        // Predicated region
        $region21: #{tpu_custom_call.1} parent=15 // pred_check
          %p154 = pneg %p77
        $region22: #{tpu_custom_call.1} parent=15 // pred_check_branch
          %156 = sbr.rel (%p154) target = $region24
        $region23: #{tpu_custom_call.1} parent=15 // pred_region
          %s157 = sand.u32 %s67, 1
          %s158 = scalar_lea.sflag [#allocation6], %s157
          %s159 = sand.u32 %s67, 1
          %s160 = smul.addr %s159, 256
          %s161 = scalar_lea.vmem [#allocation5], %s160
          %s162 = smul.u32 32, %s24
          %s164 = ssub.s32 4096, 4096
          %165 = vsyncadd %s158, %s164
          %s166 = smul.addr %s162, 128
          %s167 = scalar_lea.hbm %s1, %s166
          %s168 = sshll.u32 %s161, 4
          %s169 = int_to_ptr.vmem [resolvable:$true] %s168
          %174 = dma.hbm_to_vmem [thread:$0]  %s167, 4096, %s169, %s158, 128, 128, 8
        $region24: #{tpu_custom_call.1} parent=15 // pred_fallthru
          _
      $region16: #{tpu_custom_call.1} parent=5 // pred_fallthru
        _
      %p175 = scmp.le.s32.totalorder 1, %s17
      %p176 = scmp.lt.s32.totalorder %s17, 9
      %p177 = pnand %p175, %p176
      %p178 = pneg %p177
      // Predicated region
      $region25: #{tpu_custom_call.1} parent=5 // pred_check
        _
      $region26: #{tpu_custom_call.1} parent=5 // pred_check_branch
        %180 = sbr.rel (%p177) target = $region28
      $region27: #{tpu_custom_call.1} parent=5 // pred_region
        %s181 = ssub.s32 %s17, 1
        %s182 = sand.u32 %s44, 1
        %s183 = scalar_lea.sflag [#allocation3], %s182
        %s184 = sand.u32 %s44, 1
        %s185 = smul.addr %s184, 512
        %s186 = scalar_lea.vmem [#allocation2], %s185
        // Predicated region
        $region29: #{tpu_custom_call.1} parent=27 // pred_check
          %p187 = pneg %p57
        $region30: #{tpu_custom_call.1} parent=27 // pred_check_branch
          %189 = sbr.rel (%p187) target = $region32
        $region31: #{tpu_custom_call.1} parent=27 // pred_region
          %190 = dma.done %s183, 8192
        $region32: #{tpu_custom_call.1} parent=27 // pred_fallthru
          _
        %s191 = sand.u32 %s70, 1
        %s192 = scalar_lea.sflag [#allocation6], %s191
        %s193 = sand.u32 %s70, 1
        %s194 = smul.addr %s193, 256
        %s195 = scalar_lea.vmem [#allocation5], %s194
        // Predicated region
        $region33: #{tpu_custom_call.1} parent=27 // pred_check
          %p196 = pneg %p83
        $region34: #{tpu_custom_call.1} parent=27 // pred_check_branch
          %198 = sbr.rel (%p196) target = $region36
        $region35: #{tpu_custom_call.1} parent=27 // pred_region
          %199 = dma.done %s192, 4096
        $region36: #{tpu_custom_call.1} parent=27 // pred_fallthru
          _
        %s200 = sand.u32 %s44, 1
        %s201 = scalar_lea.sflag [#allocation3], %s200
        %s202 = sand.u32 %s44, 1
        %s203 = smul.addr %s202, 512
        %s204 = scalar_lea.vmem [#allocation2], %s203
        %p205 = pneg %p57
        %p206 = pneg %p54
        %s207 = sand.u32 %s70, 1
        %s208 = scalar_lea.sflag [#allocation6], %s207
        %s209 = sand.u32 %s70, 1
        %s210 = smul.addr %s209, 256
        %s211 = scalar_lea.vmem [#allocation5], %s210
        %p212 = pneg %p83
        %p213 = pneg %p80
        %p214 = pneg %p111
        %p215 = pneg %p108
        %s216 = sand.u32 %s98, 1
        %s217 = scalar_lea.sflag [#allocation4], %s216
        %s218 = sand.u32 %s98, 1
        %s219 = smul.addr %s218, 512
        %s220 = scalar_lea.vmem [#allocation7], %s219
        %s221 = smul.u32 32, %s26
        %s222 = smul.u32 2, %s27
        %s223 = smul.u32 32, %s26
        %s224 = smul.u32 32, %s26
        %s225 = smul.u32 2, %s27
        %v226 = vld [vmem:[%s195] sm:$0xff]
        %v227 = vld [vmem:[%s195 + $0x8] sm:$0xff]
        %v228 = vld [vmem:[%s195 + $0x10] sm:$0xff]
        %v229 = vld [vmem:[%s195 + $0x18] sm:$0xff]
        %v230 = vld [vmem:[%s195 + $0x20] sm:$0xff]
        %v231 = vld [vmem:[%s195 + $0x28] sm:$0xff]
        %v232 = vld [vmem:[%s195 + $0x30] sm:$0xff]
        %v233 = vld [vmem:[%s195 + $0x38] sm:$0xff]
        %v234 = vld [vmem:[%s195 + $0x40] sm:$0xff]
        %v235 = vld [vmem:[%s195 + $0x48] sm:$0xff]
        %v236 = vld [vmem:[%s195 + $0x50] sm:$0xff]
        %v237 = vld [vmem:[%s195 + $0x58] sm:$0xff]
        %v238 = vld [vmem:[%s195 + $0x60] sm:$0xff]
        %v239 = vld [vmem:[%s195 + $0x68] sm:$0xff]
        %v240 = vld [vmem:[%s195 + $0x70] sm:$0xff]
        %v241 = vld [vmem:[%s195 + $0x78] sm:$0xff]
        %v242 = vld [vmem:[%s195 + $0x80] sm:$0xff]
        %v243 = vld [vmem:[%s195 + $0x88] sm:$0xff]
        %v244 = vld [vmem:[%s195 + $0x90] sm:$0xff]
        %v245 = vld [vmem:[%s195 + $0x98] sm:$0xff]
        %v246 = vld [vmem:[%s195 + $0xa0] sm:$0xff]
        %v247 = vld [vmem:[%s195 + $0xa8] sm:$0xff]
        %v248 = vld [vmem:[%s195 + $0xb0] sm:$0xff]
        %v249 = vld [vmem:[%s195 + $0xb8] sm:$0xff]
        %v250 = vld [vmem:[%s195 + $0xc0] sm:$0xff]
        %v251 = vld [vmem:[%s195 + $0xc8] sm:$0xff]
        %v252 = vld [vmem:[%s195 + $0xd0] sm:$0xff]
        %v253 = vld [vmem:[%s195 + $0xd8] sm:$0xff]
        %v254 = vld [vmem:[%s195 + $0xe0] sm:$0xff]
        %v255 = vld [vmem:[%s195 + $0xe8] sm:$0xff]
        %v256 = vld [vmem:[%s195 + $0xf0] sm:$0xff]
        %v257 = vld [vmem:[%s195 + $0xf8] sm:$0xff]
        %v258 = vld [vmem:[%s186] sm:$0xff]
        %v259 = vld [vmem:[%s186 + $0x10] sm:$0xff]
        %v260 = vld [vmem:[%s186 + $0x20] sm:$0xff]
        %v261 = vld [vmem:[%s186 + $0x30] sm:$0xff]
        %v262 = vld [vmem:[%s186 + $0x40] sm:$0xff]
        %v263 = vld [vmem:[%s186 + $0x50] sm:$0xff]
        %v264 = vld [vmem:[%s186 + $0x60] sm:$0xff]
        %v265 = vld [vmem:[%s186 + $0x70] sm:$0xff]
        %v266 = vld [vmem:[%s186 + $0x80] sm:$0xff]
        %v267 = vld [vmem:[%s186 + $0x90] sm:$0xff]
        %v268 = vld [vmem:[%s186 + $0xa0] sm:$0xff]
        %v269 = vld [vmem:[%s186 + $0xb0] sm:$0xff]
        %v270 = vld [vmem:[%s186 + $0xc0] sm:$0xff]
        %v271 = vld [vmem:[%s186 + $0xd0] sm:$0xff]
        %v272 = vld [vmem:[%s186 + $0xe0] sm:$0xff]
        %v273 = vld [vmem:[%s186 + $0xf0] sm:$0xff]
        %v274 = vld [vmem:[%s186 + $0x100] sm:$0xff]
        %v275 = vld [vmem:[%s186 + $0x110] sm:$0xff]
        %v276 = vld [vmem:[%s186 + $0x120] sm:$0xff]
        %v277 = vld [vmem:[%s186 + $0x130] sm:$0xff]
        %v278 = vld [vmem:[%s186 + $0x140] sm:$0xff]
        %v279 = vld [vmem:[%s186 + $0x150] sm:$0xff]
        %v280 = vld [vmem:[%s186 + $0x160] sm:$0xff]
        %v281 = vld [vmem:[%s186 + $0x170] sm:$0xff]
        %v282 = vld [vmem:[%s186 + $0x180] sm:$0xff]
        %v283 = vld [vmem:[%s186 + $0x190] sm:$0xff]
        %v284 = vld [vmem:[%s186 + $0x1a0] sm:$0xff]
        %v285 = vld [vmem:[%s186 + $0x1b0] sm:$0xff]
        %v286 = vld [vmem:[%s186 + $0x1c0] sm:$0xff]
        %v287 = vld [vmem:[%s186 + $0x1d0] sm:$0xff]
        %v288 = vld [vmem:[%s186 + $0x1e0] sm:$0xff]
        %v289 = vld [vmem:[%s186 + $0x1f0] sm:$0xff]
        %v290 = vadd.f32 %v258, %v226
        %v291 = vadd.f32 %v259, %v227
        %v292 = vadd.f32 %v260, %v228
        %v293 = vadd.f32 %v261, %v229
        %v294 = vadd.f32 %v262, %v230
        %v295 = vadd.f32 %v263, %v231
        %v296 = vadd.f32 %v264, %v232
        %v297 = vadd.f32 %v265, %v233
        %v298 = vadd.f32 %v266, %v234
        %v299 = vadd.f32 %v267, %v235
        %v300 = vadd.f32 %v268, %v236
        %v301 = vadd.f32 %v269, %v237
        %v302 = vadd.f32 %v270, %v238
        %v303 = vadd.f32 %v271, %v239
        %v304 = vadd.f32 %v272, %v240
        %v305 = vadd.f32 %v273, %v241
        %v306 = vadd.f32 %v274, %v242
        %v307 = vadd.f32 %v275, %v243
        %v308 = vadd.f32 %v276, %v244
        %v309 = vadd.f32 %v277, %v245
        %v310 = vadd.f32 %v278, %v246
        %v311 = vadd.f32 %v279, %v247
        %v312 = vadd.f32 %v280, %v248
        %v313 = vadd.f32 %v281, %v249
        %v314 = vadd.f32 %v282, %v250
        %v315 = vadd.f32 %v283, %v251
        %v316 = vadd.f32 %v284, %v252
        %v317 = vadd.f32 %v285, %v253
        %v318 = vadd.f32 %v286, %v254
        %v319 = vadd.f32 %v287, %v255
        %v320 = vadd.f32 %v288, %v256
        %v321 = vadd.f32 %v289, %v257
        %322 = vst [vmem:[%s220] sm:$0xff] %v290
        %323 = vst [vmem:[%s220 + $0x10] sm:$0xff] %v291
        %324 = vst [vmem:[%s220 + $0x20] sm:$0xff] %v292
        %325 = vst [vmem:[%s220 + $0x30] sm:$0xff] %v293
        %326 = vst [vmem:[%s220 + $0x40] sm:$0xff] %v294
        %327 = vst [vmem:[%s220 + $0x50] sm:$0xff] %v295
        %328 = vst [vmem:[%s220 + $0x60] sm:$0xff] %v296
        %329 = vst [vmem:[%s220 + $0x70] sm:$0xff] %v297
        %330 = vst [vmem:[%s220 + $0x80] sm:$0xff] %v298
        %331 = vst [vmem:[%s220 + $0x90] sm:$0xff] %v299
        %332 = vst [vmem:[%s220 + $0xa0] sm:$0xff] %v300
        %333 = vst [vmem:[%s220 + $0xb0] sm:$0xff] %v301
        %334 = vst [vmem:[%s220 + $0xc0] sm:$0xff] %v302
        %335 = vst [vmem:[%s220 + $0xd0] sm:$0xff] %v303
        %336 = vst [vmem:[%s220 + $0xe0] sm:$0xff] %v304
        %337 = vst [vmem:[%s220 + $0xf0] sm:$0xff] %v305
        %338 = vst [vmem:[%s220 + $0x100] sm:$0xff] %v306
        %339 = vst [vmem:[%s220 + $0x110] sm:$0xff] %v307
        %340 = vst [vmem:[%s220 + $0x120] sm:$0xff] %v308
        %341 = vst [vmem:[%s220 + $0x130] sm:$0xff] %v309
        %342 = vst [vmem:[%s220 + $0x140] sm:$0xff] %v310
        %343 = vst [vmem:[%s220 + $0x150] sm:$0xff] %v311
        %344 = vst [vmem:[%s220 + $0x160] sm:$0xff] %v312
        %345 = vst [vmem:[%s220 + $0x170] sm:$0xff] %v313
        %346 = vst [vmem:[%s220 + $0x180] sm:$0xff] %v314
        %347 = vst [vmem:[%s220 + $0x190] sm:$0xff] %v315
        %348 = vst [vmem:[%s220 + $0x1a0] sm:$0xff] %v316
        %349 = vst [vmem:[%s220 + $0x1b0] sm:$0xff] %v317
        %350 = vst [vmem:[%s220 + $0x1c0] sm:$0xff] %v318
        %351 = vst [vmem:[%s220 + $0x1d0] sm:$0xff] %v319
        %352 = vst [vmem:[%s220 + $0x1e0] sm:$0xff] %v320
        %353 = vst [vmem:[%s220 + $0x1f0] sm:$0xff] %v321
        %v354 = vld [vmem:[%s186 + $0x8] sm:$0xff]
        %v355 = vld [vmem:[%s186 + $0x18] sm:$0xff]
        %v356 = vld [vmem:[%s186 + $0x28] sm:$0xff]
        %v357 = vld [vmem:[%s186 + $0x38] sm:$0xff]
        %v358 = vld [vmem:[%s186 + $0x48] sm:$0xff]
        %v359 = vld [vmem:[%s186 + $0x58] sm:$0xff]
        %v360 = vld [vmem:[%s186 + $0x68] sm:$0xff]
        %v361 = vld [vmem:[%s186 + $0x78] sm:$0xff]
        %v362 = vld [vmem:[%s186 + $0x88] sm:$0xff]
        %v363 = vld [vmem:[%s186 + $0x98] sm:$0xff]
        %v364 = vld [vmem:[%s186 + $0xa8] sm:$0xff]
        %v365 = vld [vmem:[%s186 + $0xb8] sm:$0xff]
        %v366 = vld [vmem:[%s186 + $0xc8] sm:$0xff]
        %v367 = vld [vmem:[%s186 + $0xd8] sm:$0xff]
        %v368 = vld [vmem:[%s186 + $0xe8] sm:$0xff]
        %v369 = vld [vmem:[%s186 + $0xf8] sm:$0xff]
        %v370 = vld [vmem:[%s186 + $0x108] sm:$0xff]
        %v371 = vld [vmem:[%s186 + $0x118] sm:$0xff]
        %v372 = vld [vmem:[%s186 + $0x128] sm:$0xff]
        %v373 = vld [vmem:[%s186 + $0x138] sm:$0xff]
        %v374 = vld [vmem:[%s186 + $0x148] sm:$0xff]
        %v375 = vld [vmem:[%s186 + $0x158] sm:$0xff]
        %v376 = vld [vmem:[%s186 + $0x168] sm:$0xff]
        %v377 = vld [vmem:[%s186 + $0x178] sm:$0xff]
        %v378 = vld [vmem:[%s186 + $0x188] sm:$0xff]
        %v379 = vld [vmem:[%s186 + $0x198] sm:$0xff]
        %v380 = vld [vmem:[%s186 + $0x1a8] sm:$0xff]
        %v381 = vld [vmem:[%s186 + $0x1b8] sm:$0xff]
        %v382 = vld [vmem:[%s186 + $0x1c8] sm:$0xff]
        %v383 = vld [vmem:[%s186 + $0x1d8] sm:$0xff]
        %v384 = vld [vmem:[%s186 + $0x1e8] sm:$0xff]
        %v385 = vld [vmem:[%s186 + $0x1f8] sm:$0xff]
        %v386 = vadd.f32 %v354, %v226
        %v387 = vadd.f32 %v355, %v227
        %v388 = vadd.f32 %v356, %v228
        %v389 = vadd.f32 %v357, %v229
        %v390 = vadd.f32 %v358, %v230
        %v391 = vadd.f32 %v359, %v231
        %v392 = vadd.f32 %v360, %v232
        %v393 = vadd.f32 %v361, %v233
        %v394 = vadd.f32 %v362, %v234
        %v395 = vadd.f32 %v363, %v235
        %v396 = vadd.f32 %v364, %v236
        %v397 = vadd.f32 %v365, %v237
        %v398 = vadd.f32 %v366, %v238
        %v399 = vadd.f32 %v367, %v239
        %v400 = vadd.f32 %v368, %v240
        %v401 = vadd.f32 %v369, %v241
        %v402 = vadd.f32 %v370, %v242
        %v403 = vadd.f32 %v371, %v243
        %v404 = vadd.f32 %v372, %v244
        %v405 = vadd.f32 %v373, %v245
        %v406 = vadd.f32 %v374, %v246
        %v407 = vadd.f32 %v375, %v247
        %v408 = vadd.f32 %v376, %v248
        %v409 = vadd.f32 %v377, %v249
        %v410 = vadd.f32 %v378, %v250
        %v411 = vadd.f32 %v379, %v251
        %v412 = vadd.f32 %v380, %v252
        %v413 = vadd.f32 %v381, %v253
        %v414 = vadd.f32 %v382, %v254
        %v415 = vadd.f32 %v383, %v255
        %v416 = vadd.f32 %v384, %v256
        %v417 = vadd.f32 %v385, %v257
        %418 = vst [vmem:[%s220 + $0x8] sm:$0xff] %v386
        %419 = vst [vmem:[%s220 + $0x18] sm:$0xff] %v387
        %420 = vst [vmem:[%s220 + $0x28] sm:$0xff] %v388
        %421 = vst [vmem:[%s220 + $0x38] sm:$0xff] %v389
        %422 = vst [vmem:[%s220 + $0x48] sm:$0xff] %v390
        %423 = vst [vmem:[%s220 + $0x58] sm:$0xff] %v391
        %424 = vst [vmem:[%s220 + $0x68] sm:$0xff] %v392
        %425 = vst [vmem:[%s220 + $0x78] sm:$0xff] %v393
        %426 = vst [vmem:[%s220 + $0x88] sm:$0xff] %v394
        %427 = vst [vmem:[%s220 + $0x98] sm:$0xff] %v395
        %428 = vst [vmem:[%s220 + $0xa8] sm:$0xff] %v396
        %429 = vst [vmem:[%s220 + $0xb8] sm:$0xff] %v397
        %430 = vst [vmem:[%s220 + $0xc8] sm:$0xff] %v398
        %431 = vst [vmem:[%s220 + $0xd8] sm:$0xff] %v399
        %432 = vst [vmem:[%s220 + $0xe8] sm:$0xff] %v400
        %433 = vst [vmem:[%s220 + $0xf8] sm:$0xff] %v401
        %434 = vst [vmem:[%s220 + $0x108] sm:$0xff] %v402
        %435 = vst [vmem:[%s220 + $0x118] sm:$0xff] %v403
        %436 = vst [vmem:[%s220 + $0x128] sm:$0xff] %v404
        %437 = vst [vmem:[%s220 + $0x138] sm:$0xff] %v405
        %438 = vst [vmem:[%s220 + $0x148] sm:$0xff] %v406
        %439 = vst [vmem:[%s220 + $0x158] sm:$0xff] %v407
        %440 = vst [vmem:[%s220 + $0x168] sm:$0xff] %v408
        %441 = vst [vmem:[%s220 + $0x178] sm:$0xff] %v409
        %442 = vst [vmem:[%s220 + $0x188] sm:$0xff] %v410
        %443 = vst [vmem:[%s220 + $0x198] sm:$0xff] %v411
        %444 = vst [vmem:[%s220 + $0x1a8] sm:$0xff] %v412
        %445 = vst [vmem:[%s220 + $0x1b8] sm:$0xff] %v413
        %446 = vst [vmem:[%s220 + $0x1c8] sm:$0xff] %v414
        %447 = vst [vmem:[%s220 + $0x1d8] sm:$0xff] %v415
        %448 = vst [vmem:[%s220 + $0x1e8] sm:$0xff] %v416
        %449 = vst [vmem:[%s220 + $0x1f8] sm:$0xff] %v417
        %s450 = sand.u32 %s98, 1
        %s451 = scalar_lea.sflag [#allocation4], %s450
        %s452 = sand.u32 %s98, 1
        %s453 = smul.addr %s452, 512
        %s454 = scalar_lea.vmem [#allocation7], %s453
        // Predicated region
        $region37: #{tpu_custom_call.1} parent=27 // pred_check
          %p455 = pneg %p108
        $region38: #{tpu_custom_call.1} parent=27 // pred_check_branch
          %457 = sbr.rel (%p455) target = $region40
        $region39: #{tpu_custom_call.1} parent=27 // pred_region
          %s458 = smul.u32 32, %s26
          %s459 = smul.u32 2, %s27
          %s461 = ssub.s32 8192, 8192
          %462 = vsyncadd %s451, %s461
          %s463 = smul.addr %s458, 2
          %s464 = sadd.s32 %s459, %s463
          %s465 = smul.addr %s464, 128
          %s466 = scalar_lea.hbm %s2, %s465
          %s467 = sshll.u32 %s454, 4
          %s468 = int_to_ptr.vmem [resolvable:$true] %s467
          %473 = dma.vmem_to_hbm [thread:$0]  %s468, 8192, %s466, %s451, 256, 256, 16
        $region40: #{tpu_custom_call.1} parent=27 // pred_fallthru
          _
      $region28: #{tpu_custom_call.1} parent=5 // pred_fallthru
        _
      %p474 = scmp.le.s32.totalorder 2, %s17
      // Predicated region
      $region41: #{tpu_custom_call.1} parent=5 // pred_check
        %p475 = pneg %p474
      $region42: #{tpu_custom_call.1} parent=5 // pred_check_branch
        %477 = sbr.rel (%p475) target = $region44
      $region43: #{tpu_custom_call.1} parent=5 // pred_region
        %s478 = ssub.s32 %s17, 2
        // Predicated region
        $region45: #{tpu_custom_call.1} parent=43 // pred_check
          %p479 = pneg %p114
        $region46: #{tpu_custom_call.1} parent=43 // pred_check_branch
          %481 = sbr.rel (%p479) target = $region48
        $region47: #{tpu_custom_call.1} parent=43 // pred_region
          %s482 = sand.u32 %s99, 1
          %s483 = scalar_lea.sflag [#allocation4], %s482
          %s484 = sand.u32 %s99, 1
          %s485 = smul.addr %s484, 512
          %s486 = scalar_lea.vmem [#allocation7], %s485
          %487 = dma.done %s483, 8192
        $region48: #{tpu_custom_call.1} parent=43 // pred_fallthru
          _
      $region44: #{tpu_custom_call.1} parent=5 // pred_fallthru
        _
    $region6: #{tpu_custom_call.1} parent=1 // loop_footer
      %s21 = sadd.s32 1, %s17
    $region7: #{tpu_custom_call.1} parent=1 // loop_footer_branch
      %16 = sbr.rel target = $region3
    $region8: #{tpu_custom_call.1} parent=1 // loop_exit
      _
    %488 = vsyncpa [#allocation3], 1
    %s489 = scalar_lea.sflag [#allocation3], 1
    %490 = vsyncpa %s489, 1
    %491 = vsyncpa [#allocation6], 1
    %s492 = scalar_lea.sflag [#allocation6], 1
    %493 = vsyncpa %s492, 1
    %494 = vsyncpa [#allocation4], 1
    %s495 = scalar_lea.sflag [#allocation4], 1
    %496 = vsyncpa %s495, 1

</llo_original>
